<compile_context>
chip_gen: v7x
topology: tpu7x:2x2x1
jax: 0.10.0
libtpu: 0.0.40
codegen_flags: <defaults>
</compile_context>

<pallas_src>
import functools

import jax
import jax.numpy as jnp
from jax.experimental import pallas as pl
from jax.experimental.pallas import tpu as pltpu


def _round_up(x, m):
    return ((x + m - 1) // m) * m


def _contrastive_loss_kernel(o1_ref, o2_ref, lab_ref, out_ref, *, margin, eps):
    o1 = o1_ref[...].astype(jnp.float32)          # (TB, D)
    o2 = o2_ref[...].astype(jnp.float32)          # (TB, D)
    lab = lab_ref[...]                            # (TB, 1) f32

    # torch.nn.functional.pairwise_distance: ||x1 - x2 + eps||_2, eps = 1e-6.
    # Block covers the full embedding dim, so every column seen here is real.
    diff = o1 - o2 + eps
    d2 = jnp.sum(diff * diff, axis=-1, keepdims=True)    # (TB, 1)
    d = jnp.sqrt(d2)                                      # euclidean distance (EUP)
    hinge = jnp.maximum(margin - d, 0.0)                  # clamp(margin - d, min=0)
    # Reuse d2 for the positive term.  Rows beyond the true batch (partial last
    # tile) are computed on garbage but never written back (OOB writes discarded)
    # and never mix into valid rows (all math here is row-local).
    out_ref[...] = (1.0 - lab) * d2 + lab * (hinge * hinge)


def contrastive_loss(output1, output2, label, margin=2.0, *, block_rows=None):
    """Pallas TPU implementation of ContrastiveLoss.forward.

    output1, output2: (B, D) float arrays (f32 / bf16 / f16).
    label:            (B,) or (B, 1) array (0 = similar pair, 1 = dissimilar).
    Returns a scalar float32 loss.
    """
    B, D = output1.shape
    itemsize = jnp.dtype(output1.dtype).itemsize

    # Lane-padded width only used for VMEM sizing (Mosaic pads lanes internally).
    d_pad = _round_up(D, 128)

    # Pick a batch tile: 2 inputs x 2 pipeline buffers x TB x d_pad x itemsize
    # kept around ~16 MiB -> double-buffers comfortably under a 32 MiB limit.
    if block_rows is None:
        budget = 16 * 1024 * 1024
        tb = budget // (4 * d_pad * itemsize)
        tb = min(4096, tb)
    else:
        tb = block_rows
    tb = max(16, (tb // 16) * 16)          # multiple of 16 (covers bf16 sublane tile)
    tb = min(tb, _round_up(B, 16))         # don't allocate far past the batch

    n_tiles = pl.cdiv(B, tb)

    lab = jnp.reshape(label, (B, 1)).astype(jnp.float32)

    kernel = functools.partial(
        _contrastive_loss_kernel, margin=float(margin), eps=1e-6)

    cost = pl.CostEstimate(
        flops=4 * B * D + 8 * B,
        transcendentals=B,
        bytes_accessed=2 * B * D * itemsize + 2 * B * 4)

    per_row = pl.pallas_call(
        kernel,
        out_shape=jax.ShapeDtypeStruct((B, 1), jnp.float32),
        grid=(n_tiles,),
        in_specs=[
            pl.BlockSpec((tb, D), lambda i: (i, 0)),
            pl.BlockSpec((tb, D), lambda i: (i, 0)),
            pl.BlockSpec((tb, 1), lambda i: (i, 0)),
        ],
        out_specs=pl.BlockSpec((tb, 1), lambda i: (i, 0)),
        compiler_params=pltpu.CompilerParams(
            dimension_semantics=("parallel",),
            vmem_limit_bytes=32 * 1024 * 1024),
        cost_estimate=cost,
    )(output1, output2, lab)

    # Second (tiny) pass: mean over exactly the true batch rows.
    return jnp.sum(per_row) / jnp.float32(B)


def contrastive_loss_ref(output1, output2, label, margin=2.0):
    """Pure-JAX reference matching the PyTorch forward exactly."""
    diff = output1.astype(jnp.float32) - output2.astype(jnp.float32) + 1e-6
    d = jnp.sqrt(jnp.sum(diff * diff, axis=-1))
    lab = jnp.reshape(label, d.shape).astype(jnp.float32)
    loss = (1.0 - lab) * d ** 2 + lab * jnp.maximum(margin - d, 0.0) ** 2
    return jnp.mean(loss)


if __name__ == "__main__":
    key = jax.random.PRNGKey(0)
    keys = jax.random.split(key, 9)

    # Case 1: lane-dense embedding dim, f32, single tile.
    B, D = 64, 128
    o1 = jax.random.normal(keys[0], (B, D), dtype=jnp.float32)
    o2 = jax.random.normal(keys[1], (B, D), dtype=jnp.float32)
    lab = jax.random.bernoulli(keys[2], 0.5, (B,)).astype(jnp.float32)
    out = jax.block_until_ready(contrastive_loss(o1, o2, lab, margin=2.0))
    ref = contrastive_loss_ref(o1, o2, lab, margin=2.0)
    assert jnp.allclose(out, ref, rtol=1e-5, atol=1e-5), (out, ref)

    # Case 2: bf16 inputs, ragged B and D (exercises partial last batch tile,
    # full-D non-128-multiple blocks, multi-tile parallel grid, and 16-bit HBM
    # loads with in-register f32 upcast).
    B2, D2 = 50, 96
    p1 = jax.random.normal(keys[3], (B2, D2), dtype=jnp.bfloat16)
    p2 = jax.random.normal(keys[4], (B2, D2), dtype=jnp.bfloat16)
    lab2 = jax.random.bernoulli(keys[5], 0.5, (B2,)).astype(jnp.float32)
    out2 = jax.block_until_ready(
        contrastive_loss(p1, p2, lab2, margin=2.0, block_rows=16))
    ref2 = contrastive_loss_ref(p1, p2, lab2, margin=2.0)
    assert jnp.allclose(out2, ref2, rtol=1e-4, atol=1e-4), (out2, ref2)

    # Case 3: f32, ragged B and D, multiple tiles with a partial final block.
    B3, D3 = 200, 200
    q1 = jax.random.normal(keys[6], (B3, D3), dtype=jnp.float32)
    q2 = jax.random.normal(keys[7], (B3, D3), dtype=jnp.float32)
    lab3 = jax.random.bernoulli(keys[8], 0.5, (B3,)).astype(jnp.float32)
    out3 = jax.block_until_ready(
        contrastive_loss(q1, q2, lab3, margin=2.0, block_rows=64))
    ref3 = contrastive_loss_ref(q1, q2, lab3, margin=2.0)
    assert jnp.allclose(out3, ref3, rtol=1e-5, atol=1e-5), (out3, ref3)

    print("KERNEL_OK")
</pallas_src>

<mosaic_0001>
module attributes {stable_mosaic.version = 11 : i64} {
  func.func @_contrastive_loss_kernel(%arg0: i32, %arg1: memref<64x128xf32, #tpu.memory_space<vmem>>, %arg2: memref<64x128xf32, #tpu.memory_space<vmem>>, %arg3: memref<64x1xf32, #tpu.memory_space<vmem>>, %arg4: memref<64x1xf32, #tpu.memory_space<vmem>>) attributes {dimension_semantics = [#tpu.dimension_semantics<parallel>], iteration_bounds = array<i64: 1>, scalar_prefetch = 0 : i64, scratch_operands = 0 : i64, tpu.core_type = #tpu.core_type<tc>, window_params = [{transform_indices = @transform_0, window_bounds = array<i64: 64, 128>}, {transform_indices = @transform_1, window_bounds = array<i64: 64, 128>}, {transform_indices = @transform_2, window_bounds = array<i64: 64, 1>}, {transform_indices = @transform_3, window_bounds = array<i64: 64, 1>}]} {
    %c0 = arith.constant 0 : index
    %c0_0 = arith.constant 0 : index
    %0 = vector.load %arg1[%c0, %c0_0] : memref<64x128xf32, #tpu.memory_space<vmem>>, vector<64x128xf32>
    %c0_1 = arith.constant 0 : index
    %c0_2 = arith.constant 0 : index
    %1 = vector.load %arg2[%c0_1, %c0_2] : memref<64x128xf32, #tpu.memory_space<vmem>>, vector<64x128xf32>
    %c0_3 = arith.constant 0 : index
    %c0_4 = arith.constant 0 : index
    %2 = vector.load %arg3[%c0_3, %c0_4] : memref<64x1xf32, #tpu.memory_space<vmem>>, vector<64x1xf32>
    %3 = arith.subf %0, %1 : vector<64x128xf32>
    %cst = arith.constant 9.99999997E-7 : f32
    %4 = vector.broadcast %cst : f32 to vector<64x128xf32>
    %5 = arith.addf %3, %4 : vector<64x128xf32>
    %6 = arith.mulf %5, %5 : vector<64x128xf32>
    %cst_5 = arith.constant dense<0.000000e+00> : vector<64xf32>
    %7 = vector.multi_reduction <add>, %6, %cst_5 [1] : vector<64x128xf32> to vector<64xf32>
    %8 = vector.shape_cast %7 : vector<64xf32> to vector<64x1xf32>
    %9 = math.sqrt %8 : vector<64x1xf32>
    %cst_6 = arith.constant 2.000000e+00 : f32
    %10 = vector.broadcast %cst_6 : f32 to vector<64x1xf32>
    %11 = arith.subf %10, %9 : vector<64x1xf32>
    %cst_7 = arith.constant 0.000000e+00 : f32
    %12 = vector.broadcast %cst_7 : f32 to vector<64x1xf32>
    %13 = arith.maximumf %11, %12 : vector<64x1xf32>
    %cst_8 = arith.constant 1.000000e+00 : f32
    %14 = vector.broadcast %cst_8 : f32 to vector<64x1xf32>
    %15 = arith.subf %14, %2 : vector<64x1xf32>
    %16 = arith.mulf %15, %8 : vector<64x1xf32>
    %17 = arith.mulf %13, %13 : vector<64x1xf32>
    %18 = arith.mulf %2, %17 : vector<64x1xf32>
    %19 = arith.addf %16, %18 : vector<64x1xf32>
    %c0_9 = arith.constant 0 : index
    %c0_10 = arith.constant 0 : index
    %20 = vector.load %arg4[%c0_9, %c0_10] : memref<64x1xf32, #tpu.memory_space<vmem>>, vector<64x1xf32>
    tpu.vector_store %arg4[%c0_9, %c0_10], %19 {strides = array<i32>} : memref<64x1xf32, #tpu.memory_space<vmem>>, vector<64x1xf32>,
    return
  }
  func.func @transform_0(%arg0: i32) -> (i32, i32) {
    %c0_i32 = arith.constant 0 : i32
    %c0_i32_0 = arith.constant 0 : i32
    return %arg0, %c0_i32 : i32, i32
  }
  func.func @transform_1(%arg0: i32) -> (i32, i32) {
    %c0_i32 = arith.constant 0 : i32
    %c0_i32_0 = arith.constant 0 : i32
    return %arg0, %c0_i32 : i32, i32
  }
  func.func @transform_2(%arg0: i32) -> (i32, i32) {
    %c0_i32 = arith.constant 0 : i32
    %c0_i32_0 = arith.constant 0 : i32
    return %arg0, %c0_i32 : i32, i32
  }
  func.func @transform_3(%arg0: i32) -> (i32, i32) {
    %c0_i32 = arith.constant 0 : i32
    %c0_i32_0 = arith.constant 0 : i32
    return %arg0, %c0_i32 : i32, i32
  }
}

</mosaic_0001>

<llo_original>
// kernel: tpu_custom_call.1
$region0: #{tpu_custom_call.1}
  #allocation0 [shape = 'u32[]', space=smem, size = 0x4, offset = 0x4, fixed_abs, tag = 'smem constant byte address 0x4 - core index']
  #allocation1 [shape = 'u32[144,128]{1,0:T(1,128)}', space=vmem, size = 0x12000, scoped, tag = 'internal scratch']
  %s0 = inlined_call_operand.vmem [shape: f32[64,128], index: 0, kind: input, shape index: {}]
  %s1 = inlined_call_operand.hbm [shape: f32[64,128], index: 1, kind: input, shape index: {}]
  %s2 = inlined_call_operand.vmem [shape: f32[64,1], index: 2, kind: input, shape index: {}]
  %s3 = inlined_call_operand.vmem [shape: f32[64,1], index: 3, kind: output, shape index: {}]
  %s4 = sld [smem:[#allocation0]]
  $region26: #{tpu_custom_call.1} parent=0
    _
  %s6 = ssub.s32 1, %s4
  %s7 = scalar_select 0, %s6, %s4
  $region1: #{tpu_custom_call.1} parent=0
    #allocation2 [shape = 'u8[32768]{0}', space=vmem, size = 0x8000, scoped, tag = 'input window, operand 1, single buffered']
    #allocation3 [shape = 's32[1]{0}', space=sflag, size = 0x4, scoped, tag = 'scoped memory for tpu_custom_call.1']
    %8 = vsyncpa [#allocation3], 0
    // Predicated region
    $region2: #{tpu_custom_call.1} parent=1 // pred_check
      _
    $region3: #{tpu_custom_call.1} parent=1 // pred_check_branch
      %10 = sbr.rel (0) target = $region5
    $region4: #{tpu_custom_call.1} parent=1 // pred_region
      _
    $region5: #{tpu_custom_call.1} parent=1 // pred_fallthru
      _
    // Predicated region
    $region6: #{tpu_custom_call.1} parent=1 // pred_check
      _
    $region7: #{tpu_custom_call.1} parent=1 // pred_check_branch
      %12 = sbr.rel (0) target = $region9
    $region8: #{tpu_custom_call.1} parent=1 // pred_region
      %s14 = ssub.s32 1024, 1024
      %15 = vsyncadd [#allocation3], %s14
      %s16 = sshll.u32 [#allocation2], 4
      %s17 = int_to_ptr.vmem [resolvable:$true] %s16
      %22 = dma.hbm_to_vmem [thread:$0]  %s1, 1024, %s17, [#allocation3], 128, 128, 8
    $region9: #{tpu_custom_call.1} parent=1 // pred_fallthru
      _
    // Predicated region
    $region10: #{tpu_custom_call.1} parent=1 // pred_check
      _
    $region11: #{tpu_custom_call.1} parent=1 // pred_check_branch
      %24 = sbr.rel (0) target = $region13
    $region12: #{tpu_custom_call.1} parent=1 // pred_region
      _
    $region13: #{tpu_custom_call.1} parent=1 // pred_fallthru
      _
    // Predicated region
    $region14: #{tpu_custom_call.1} parent=1 // pred_check
      _
    $region15: #{tpu_custom_call.1} parent=1 // pred_check_branch
      %26 = sbr.rel (0) target = $region17
    $region16: #{tpu_custom_call.1} parent=1 // pred_region
      %27 = dma.done [#allocation3], 1024
    $region17: #{tpu_custom_call.1} parent=1 // pred_fallthru
      _
    %v28 = vld [vmem:[%s0] sm:$0xff]
    %v29 = vld [vmem:[%s0 + $0x8] sm:$0xff]
    %v30 = vld [vmem:[%s0 + $0x10] sm:$0xff]
    %v31 = vld [vmem:[%s0 + $0x18] sm:$0xff]
    %v32 = vld [vmem:[%s0 + $0x20] sm:$0xff]
    %v33 = vld [vmem:[%s0 + $0x28] sm:$0xff]
    %v34 = vld [vmem:[%s0 + $0x30] sm:$0xff]
    %v35 = vld [vmem:[%s0 + $0x38] sm:$0xff]
    %v36 = vld [vmem:[#allocation2] sm:$0xff]
    %v37 = vld [vmem:[#allocation2 + $0x8] sm:$0xff]
    %v38 = vld [vmem:[#allocation2 + $0x10] sm:$0xff]
    %v39 = vld [vmem:[#allocation2 + $0x18] sm:$0xff]
    %v40 = vld [vmem:[#allocation2 + $0x20] sm:$0xff]
    %v41 = vld [vmem:[#allocation2 + $0x28] sm:$0xff]
    %v42 = vld [vmem:[#allocation2 + $0x30] sm:$0xff]
    %v43 = vld [vmem:[#allocation2 + $0x38] sm:$0xff]
    %v44 = vld [vmem:[%s2] sm:$0xff]
    %v45 = vld [vmem:[%s2 + $0x8] sm:$0xff]
    %v46 = vld [vmem:[%s2 + $0x10] sm:$0xff]
    %v47 = vld [vmem:[%s2 + $0x18] sm:$0xff]
    %v48 = vld [vmem:[%s2 + $0x20] sm:$0xff]
    %v49 = vld [vmem:[%s2 + $0x28] sm:$0xff]
    %v50 = vld [vmem:[%s2 + $0x30] sm:$0xff]
    %v51 = vld [vmem:[%s2 + $0x38] sm:$0xff]
    %v52 = vsub.f32 %v28, %v36
    %v53 = vsub.f32 %v29, %v37
    %v54 = vsub.f32 %v30, %v38
    %v55 = vsub.f32 %v31, %v39
    %v56 = vsub.f32 %v32, %v40
    %v57 = vsub.f32 %v33, %v41
    %v58 = vsub.f32 %v34, %v42
    %v59 = vsub.f32 %v35, %v43
    %v60 = vadd.f32 %v52, 1e-06
    %v61 = vadd.f32 %v53, 1e-06
    %v62 = vadd.f32 %v54, 1e-06
    %v63 = vadd.f32 %v55, 1e-06
    %v64 = vadd.f32 %v56, 1e-06
    %v65 = vadd.f32 %v57, 1e-06
    %v66 = vadd.f32 %v58, 1e-06
    %v67 = vadd.f32 %v59, 1e-06
    %v68 = vmul.f32 %v60, %v60
    %v69 = vmul.f32 %v61, %v61
    %v70 = vmul.f32 %v62, %v62
    %v71 = vmul.f32 %v63, %v63
    %v72 = vmul.f32 %v64, %v64
    %v73 = vmul.f32 %v65, %v65
    %v74 = vmul.f32 %v66, %v66
    %v75 = vmul.f32 %v67, %v67
    %76 = vadd.xlane.f32.xlu0 %v68
    %v77 = vpop.xlane.xlu0 %76
    %78 = vadd.xlane.f32.xlu0 %v69
    %v79 = vpop.xlane.xlu0 %78
    %80 = vadd.xlane.f32.xlu0 %v70
    %v81 = vpop.xlane.xlu0 %80
    %82 = vadd.xlane.f32.xlu0 %v71
    %v83 = vpop.xlane.xlu0 %82
    %84 = vadd.xlane.f32.xlu0 %v72
    %v85 = vpop.xlane.xlu0 %84
    %86 = vadd.xlane.f32.xlu0 %v73
    %v87 = vpop.xlane.xlu0 %86
    %88 = vadd.xlane.f32.xlu0 %v74
    %v89 = vpop.xlane.xlu0 %88
    %90 = vadd.xlane.f32.xlu0 %v75
    %v91 = vpop.xlane.xlu0 %90
    %v92 = vrsqrt.pop %v77
    %v93 = vmul.f32 %v77, %v92
    %vm94 = vcmp.eq.f32.partialorder %v77, inf
    %v95 = vsel %vm94, %v77, %v93
    %vm96 = vcmp.eq.f32.partialorder %v77, 0.0
    %v97 = vand.u32 %v77, 2147483648
    %v98 = vsel %vm96, %v97, %v95
    %v99 = vrsqrt.pop %v79
    %v100 = vmul.f32 %v79, %v99
    %vm101 = vcmp.eq.f32.partialorder %v79, inf
    %v102 = vsel %vm101, %v79, %v100
    %vm103 = vcmp.eq.f32.partialorder %v79, 0.0
    %v104 = vand.u32 %v79, 2147483648
    %v105 = vsel %vm103, %v104, %v102
    %v106 = vrsqrt.pop %v81
    %v107 = vmul.f32 %v81, %v106
    %vm108 = vcmp.eq.f32.partialorder %v81, inf
    %v109 = vsel %vm108, %v81, %v107
    %vm110 = vcmp.eq.f32.partialorder %v81, 0.0
    %v111 = vand.u32 %v81, 2147483648
    %v112 = vsel %vm110, %v111, %v109
    %v113 = vrsqrt.pop %v83
    %v114 = vmul.f32 %v83, %v113
    %vm115 = vcmp.eq.f32.partialorder %v83, inf
    %v116 = vsel %vm115, %v83, %v114
    %vm117 = vcmp.eq.f32.partialorder %v83, 0.0
    %v118 = vand.u32 %v83, 2147483648
    %v119 = vsel %vm117, %v118, %v116
    %v120 = vrsqrt.pop %v85
    %v121 = vmul.f32 %v85, %v120
    %vm122 = vcmp.eq.f32.partialorder %v85, inf
    %v123 = vsel %vm122, %v85, %v121
    %vm124 = vcmp.eq.f32.partialorder %v85, 0.0
    %v125 = vand.u32 %v85, 2147483648
    %v126 = vsel %vm124, %v125, %v123
    %v127 = vrsqrt.pop %v87
    %v128 = vmul.f32 %v87, %v127
    %vm129 = vcmp.eq.f32.partialorder %v87, inf
    %v130 = vsel %vm129, %v87, %v128
    %vm131 = vcmp.eq.f32.partialorder %v87, 0.0
    %v132 = vand.u32 %v87, 2147483648
    %v133 = vsel %vm131, %v132, %v130
    %v134 = vrsqrt.pop %v89
    %v135 = vmul.f32 %v89, %v134
    %vm136 = vcmp.eq.f32.partialorder %v89, inf
    %v137 = vsel %vm136, %v89, %v135
    %vm138 = vcmp.eq.f32.partialorder %v89, 0.0
    %v139 = vand.u32 %v89, 2147483648
    %v140 = vsel %vm138, %v139, %v137
    %v141 = vrsqrt.pop %v91
    %v142 = vmul.f32 %v91, %v141
    %vm143 = vcmp.eq.f32.partialorder %v91, inf
    %v144 = vsel %vm143, %v91, %v142
    %vm145 = vcmp.eq.f32.partialorder %v91, 0.0
    %v146 = vand.u32 %v91, 2147483648
    %v147 = vsel %vm145, %v146, %v144
    %v148 = vsub.f32 2.0, %v98
    %v149 = vsub.f32 2.0, %v105
    %v150 = vsub.f32 2.0, %v112
    %v151 = vsub.f32 2.0, %v119
    %v152 = vsub.f32 2.0, %v126
    %v153 = vsub.f32 2.0, %v133
    %v154 = vsub.f32 2.0, %v140
    %v155 = vsub.f32 2.0, %v147
    %v156 = vmax.f32 %v148, 0.0
    %v157 = vmax.f32 %v149, 0.0
    %v158 = vmax.f32 %v150, 0.0
    %v159 = vmax.f32 %v151, 0.0
    %v160 = vmax.f32 %v152, 0.0
    %v161 = vmax.f32 %v153, 0.0
    %v162 = vmax.f32 %v154, 0.0
    %v163 = vmax.f32 %v155, 0.0
    %v164 = vsub.f32 1.0, %v44
    %v165 = vsub.f32 1.0, %v45
    %v166 = vsub.f32 1.0, %v46
    %v167 = vsub.f32 1.0, %v47
    %v168 = vsub.f32 1.0, %v48
    %v169 = vsub.f32 1.0, %v49
    %v170 = vsub.f32 1.0, %v50
    %v171 = vsub.f32 1.0, %v51
    %v172 = vmul.f32 %v164, %v77
    %v173 = vmul.f32 %v165, %v79
    %v174 = vmul.f32 %v166, %v81
    %v175 = vmul.f32 %v167, %v83
    %v176 = vmul.f32 %v168, %v85
    %v177 = vmul.f32 %v169, %v87
    %v178 = vmul.f32 %v170, %v89
    %v179 = vmul.f32 %v171, %v91
    %v180 = vmul.f32 %v156, %v156
    %v181 = vmul.f32 %v157, %v157
    %v182 = vmul.f32 %v158, %v158
    %v183 = vmul.f32 %v159, %v159
    %v184 = vmul.f32 %v160, %v160
    %v185 = vmul.f32 %v161, %v161
    %v186 = vmul.f32 %v162, %v162
    %v187 = vmul.f32 %v163, %v163
    %v188 = vmul.f32 %v44, %v180
    %v189 = vmul.f32 %v45, %v181
    %v190 = vmul.f32 %v46, %v182
    %v191 = vmul.f32 %v47, %v183
    %v192 = vmul.f32 %v48, %v184
    %v193 = vmul.f32 %v49, %v185
    %v194 = vmul.f32 %v50, %v186
    %v195 = vmul.f32 %v51, %v187
    %v196 = vadd.f32 %v172, %v188
    %v197 = vadd.f32 %v173, %v189
    %v198 = vadd.f32 %v174, %v190
    %v199 = vadd.f32 %v175, %v191
    %v200 = vadd.f32 %v176, %v192
    %v201 = vadd.f32 %v177, %v193
    %v202 = vadd.f32 %v178, %v194
    %v203 = vadd.f32 %v179, %v195
    %vm204 = vcmask 7168
    %205 = vst.msk [vmem:[%s3] sm:$0xff] %vm204, %v196
    %206 = vst.msk [vmem:[%s3 + $0x8] sm:$0xff] %vm204, %v197
    %207 = vst.msk [vmem:[%s3 + $0x10] sm:$0xff] %vm204, %v198
    %208 = vst.msk [vmem:[%s3 + $0x18] sm:$0xff] %vm204, %v199
    %209 = vst.msk [vmem:[%s3 + $0x20] sm:$0xff] %vm204, %v200
    %210 = vst.msk [vmem:[%s3 + $0x28] sm:$0xff] %vm204, %v201
    %211 = vst.msk [vmem:[%s3 + $0x30] sm:$0xff] %vm204, %v202
    %212 = vst.msk [vmem:[%s3 + $0x38] sm:$0xff] %vm204, %v203
    // Predicated region
    $region18: #{tpu_custom_call.1} parent=1 // pred_check
      _
    $region19: #{tpu_custom_call.1} parent=1 // pred_check_branch
      %214 = sbr.rel (0) target = $region21
    $region20: #{tpu_custom_call.1} parent=1 // pred_region
      _
    $region21: #{tpu_custom_call.1} parent=1 // pred_fallthru
      _
    // Predicated region
    $region22: #{tpu_custom_call.1} parent=1 // pred_check
      _
    $region23: #{tpu_custom_call.1} parent=1 // pred_check_branch
      %216 = sbr.rel (0) target = $region25
    $region24: #{tpu_custom_call.1} parent=1 // pred_region
      _
    $region25: #{tpu_custom_call.1} parent=1 // pred_fallthru
      _
    %217 = vsyncpa [#allocation3], 1

</llo_original>
